<compile_context>
chip_gen: v5e
topology: v5e:2x2
jax: 0.10.0
libtpu: 0.0.40
codegen_flags: <defaults>
</compile_context>

<pallas_src>
import functools

import jax
import jax.numpy as jnp
from jax import lax
from jax.experimental import pallas as pl
from jax.experimental.pallas import tpu as pltpu


def _focal_loss_kernel(x_ref, t_ref, *refs, n_valid, gamma, gamma_int,
                       has_alpha):
    if has_alpha:
        a_ref, out_ref = refs
    else:
        (out_ref,) = refs

    logits = x_ref[...].astype(jnp.float32)             # (TB, C) f32 in VMEM
    tgt = t_ref[...]                                     # (TB, 1) int32
    tb, c = logits.shape

    # Row-validity mask for the (possibly partial) last block.  jnp.where is
    # a select, so NaN/Inf from out-of-bounds garbage rows never propagates.
    row0 = pl.program_id(0) * tb
    row_idx = row0 + lax.broadcasted_iota(jnp.int32, (tb, 1), 0)
    valid = row_idx < n_valid                            # (TB, 1) bool

    # Stable log-sum-exp per row.  Gather the *shifted* target logit so the
    # raw f32 cast does not need to stay live past the subtraction.
    m = jnp.max(logits, axis=-1, keepdims=True)          # (TB, 1)
    shifted = logits - m                                 # (TB, C)
    col = lax.broadcasted_iota(jnp.int32, (tb, c), 1)
    onehot = col == tgt                                   # (TB, C) bool
    logit_t = jnp.sum(jnp.where(onehot, shifted, 0.0), axis=-1, keepdims=True)
    sumexp = jnp.sum(jnp.exp(shifted), axis=-1, keepdims=True)

    ce = jnp.log(sumexp) - logit_t                        # (TB, 1), >= 0
    pt = jnp.exp(-ce)                                     # thin-column EUP exp
    omp = jnp.maximum(1.0 - pt, 0.0)                      # clamp -> no pow NaN

    if gamma_int is not None:                             # static multiply chain
        if gamma_int == 0:
            w = jnp.ones_like(omp)
        else:
            w = omp
            for _ in range(gamma_int - 1):
                w = w * omp
    else:
        w = jnp.power(omp, gamma)

    focal = w * ce                                        # (TB, 1)
    if has_alpha:
        focal = a_ref[...] * focal                        # per-row alpha[target]

    psum = jnp.sum(jnp.where(valid, focal, 0.0))          # block partial sum
    out_ref[...] = jnp.reshape(psum, (1, 1, 1))


def _round_up(x, m):
    return (x + m - 1) // m * m


def _pick_block_rows(n_rows, c, in_itemsize, vmem_limit_bytes):
    if n_rows < 8:
        return n_rows                     # full-extent block, no row padding
    # Physical VMEM lanes are padded to multiples of 128 even though the
    # logical block keeps the true C (no HBM-side class padding).
    c_lanes = _round_up(c, 128)
    # Per-row VMEM bytes:
    #   * double-buffered input tile: 2 * c_lanes * itemsize
    #   * ~4 simultaneously-live full-tile f32 temporaries
    #     (cast, shifted, exp, one-hot mask): 16 * c_lanes
    #   * (TB,1) blocks (targets / alpha, double-buffered) and the handful of
    #     (TB,1) f32 temporaries, each lane-padded to 128: ~512 B/row.
    per_row = c_lanes * (2 * in_itemsize + 16) + 512
    br_vmem = (vmem_limit_bytes * 6 // 10) // per_row
    # Byte-based cap: ~4 MiB of input bytes per grid step amortizes the
    # ~0.35 us per-step overhead even when C is small, without blowing VMEM.
    br_bytes = (4 * 1024 * 1024) // max(1, c * in_itemsize)
    br = min(br_vmem, br_bytes, _round_up(n_rows, 8))
    # Keep >= 2 grid blocks so both v7x TensorCores get work (harmless on the
    # single-TC v5e/v6e: at most one extra ~0.35 us grid step).
    if n_rows >= 16:
        br = min(br, _round_up(pl.cdiv(n_rows, 2), 8))
    return int(max(8, (br // 8) * 8))


def focal_loss(inputs, targets, alpha=None, gamma=2.0, block_rows=None):
    """Mean focal loss. inputs: (N, C) logits, targets: (N,) int class ids."""
    n, c = inputs.shape
    x = inputs                                   # original dtype, no class pad
    t = jnp.asarray(targets, jnp.int32).reshape(n, 1)

    has_alpha = alpha is not None
    if has_alpha:
        alpha_vec = jnp.asarray(alpha, jnp.float32)
        a_col = alpha_vec[t[:, 0]].reshape(n, 1)          # wrapper-side gather

    # --- VMEM-sized row blocking (v7x has half the VMEM of v5e/v6e).
    try:
        vmem_cap = int(pltpu.get_tpu_info().vmem_capacity_bytes)
    except Exception:
        vmem_cap = 64 * 1024 * 1024
    vmem_limit = int(min(vmem_cap * 3 // 4, 96 * 1024 * 1024))
    if block_rows is None:
        block_rows = _pick_block_rows(n, c, x.dtype.itemsize, vmem_limit)
    n_blocks = pl.cdiv(n, block_rows)

    gamma_f = float(gamma)
    gamma_int = (int(gamma_f)
                 if gamma_f.is_integer() and 0 <= gamma_f <= 16 else None)

    kernel = functools.partial(_focal_loss_kernel, n_valid=n, gamma=gamma_f,
                               gamma_int=gamma_int, has_alpha=has_alpha)

    in_specs = [
        pl.BlockSpec((block_rows, c), lambda i: (i, 0)),   # logits tile (full C)
        pl.BlockSpec((block_rows, 1), lambda i: (i, 0)),   # targets column
    ]
    operands = [x, t]
    if has_alpha:
        in_specs.append(pl.BlockSpec((block_rows, 1), lambda i: (i, 0)))
        operands.append(a_col)                             # alpha[targets] column

    partials = pl.pallas_call(
        kernel,
        out_shape=jax.ShapeDtypeStruct((n_blocks, 1, 1), jnp.float32),
        grid=(n_blocks,),
        in_specs=in_specs,
        out_specs=pl.BlockSpec((1, 1, 1), lambda i: (i, 0, 0)),  # per-block sum
        compiler_params=pltpu.CompilerParams(
            dimension_semantics=("parallel",),
            vmem_limit_bytes=vmem_limit),
    )(*operands)

    # TODO(synk): for vocab-sized C where one (block_rows, C) f32 tile no
    # longer fits v7x VMEM, add a class-axis "arbitrary" grid dim with a
    # streaming log-sum-exp (online m/l accumulators) instead of shrinking
    # block_rows; optionally compute max/shift/exp in bf16 on v6e/v7x.
    return jnp.sum(partials) / jnp.float32(n)


def _focal_loss_ref(inputs, targets, alpha, gamma):
    logits = inputs.astype(jnp.float32)
    logp = jax.nn.log_softmax(logits, axis=-1)
    ce = -jnp.take_along_axis(logp, targets[:, None], axis=-1)[:, 0]
    pt = jnp.exp(-ce)
    focal = (1.0 - pt) ** gamma * ce
    if alpha is not None:
        focal = alpha[targets] * focal
    return jnp.mean(focal)


if __name__ == "__main__":
    key = jax.random.PRNGKey(0)
    k_x, k_t = jax.random.split(key)

    N, C = 8, 32                       # small: 8 samples, 32 classes
    gamma = 2.0

    inputs = jax.random.normal(k_x, (N, C), dtype=jnp.float32)
    targets = jax.random.randint(k_t, (N,), 0, C, dtype=jnp.int32)
    # Deterministic per-class alpha weights (as in FocalLoss(alpha=...)).
    alpha = 0.25 + 0.5 * jnp.arange(C, dtype=jnp.float32) / C

    out = focal_loss(inputs, targets, alpha=alpha, gamma=gamma)
    out = jax.block_until_ready(out)

    ref = _focal_loss_ref(inputs, targets, alpha, gamma)
    assert jnp.allclose(out, ref, rtol=1e-5, atol=1e-6), (out, ref)

    # Also exercise the alpha=None static branch once.
    out2 = jax.block_until_ready(focal_loss(inputs, targets, gamma=gamma))
    ref2 = _focal_loss_ref(inputs, targets, None, gamma)
    assert jnp.allclose(out2, ref2, rtol=1e-5, atol=1e-6), (out2, ref2)

    print("KERNEL_OK")
</pallas_src>

<mosaic_0001>
module attributes {stable_mosaic.version = 11 : i64} {
  func.func @_focal_loss_kernel(%arg0: i32, %arg1: memref<8x32xf32, #tpu.memory_space<vmem>>, %arg2: memref<8x1xi32, #tpu.memory_space<vmem>>, %arg3: memref<8x1xf32, #tpu.memory_space<vmem>>, %arg4: memref<1x1x1xf32, #tpu.memory_space<vmem>>) attributes {dimension_semantics = [#tpu.dimension_semantics<parallel>], iteration_bounds = array<i64: 1>, scalar_prefetch = 0 : i64, scratch_operands = 0 : i64, tpu.core_type = #tpu.core_type<tc>, window_params = [{transform_indices = @transform_0, window_bounds = array<i64: 8, 32>}, {transform_indices = @transform_1, window_bounds = array<i64: 8, 1>}, {transform_indices = @transform_2, window_bounds = array<i64: 8, 1>}, {transform_indices = @transform_3, window_bounds = array<i64: 1, 1, 1>}]} {
    %c0 = arith.constant 0 : index
    %c0_0 = arith.constant 0 : index
    %0 = vector.load %arg1[%c0, %c0_0] : memref<8x32xf32, #tpu.memory_space<vmem>>, vector<8x32xf32>
    %c0_1 = arith.constant 0 : index
    %c0_2 = arith.constant 0 : index
    %1 = vector.load %arg2[%c0_1, %c0_2] : memref<8x1xi32, #tpu.memory_space<vmem>>, vector<8x1xi32>
    %c8_i32 = arith.constant 8 : i32
    %2 = arith.muli %arg0, %c8_i32 : i32
    %3 = tpu.iota {dimensions = array<i32: 0>} : vector<8x1xi32>
    %4 = vector.broadcast %2 : i32 to vector<8x1xi32>
    %5 = arith.addi %4, %3 : vector<8x1xi32>
    %c8_i32_3 = arith.constant 8 : i32
    %6 = vector.broadcast %c8_i32_3 : i32 to vector<8x1xi32>
    %7 = arith.cmpi slt, %5, %6 : vector<8x1xi32>
    %cst = arith.constant dense<0xFF800000> : vector<8xf32>
    %8 = vector.multi_reduction <maximumf>, %0, %cst [1] : vector<8x32xf32> to vector<8xf32>
    %9 = vector.shape_cast %8 : vector<8xf32> to vector<8x1xf32>
    %10 = vector.broadcast %9 : vector<8x1xf32> to vector<8x32xf32>
    %11 = arith.subf %0, %10 : vector<8x32xf32>
    %12 = tpu.iota {dimensions = array<i32: 1>} : vector<8x32xi32>
    %13 = vector.broadcast %1 : vector<8x1xi32> to vector<8x32xi32>
    %14 = arith.cmpi eq, %12, %13 : vector<8x32xi32>
    %cst_4 = arith.constant 0.000000e+00 : f32
    %15 = vector.broadcast %cst_4 : f32 to vector<8x32xf32>
    %16 = arith.select %14, %11, %15 : vector<8x32xi1>, vector<8x32xf32>
    %cst_5 = arith.constant dense<0.000000e+00> : vector<8xf32>
    %17 = vector.multi_reduction <add>, %16, %cst_5 [1] : vector<8x32xf32> to vector<8xf32>
    %18 = vector.shape_cast %17 : vector<8xf32> to vector<8x1xf32>
    %19 = math.exp %11 : vector<8x32xf32>
    %cst_6 = arith.constant dense<0.000000e+00> : vector<8xf32>
    %20 = vector.multi_reduction <add>, %19, %cst_6 [1] : vector<8x32xf32> to vector<8xf32>
    %21 = vector.shape_cast %20 : vector<8xf32> to vector<8x1xf32>
    %22 = math.log %21 : vector<8x1xf32>
    %23 = arith.subf %22, %18 : vector<8x1xf32>
    %cst_7 = arith.constant 0.000000e+00 : f32
    %24 = vector.broadcast %cst_7 : f32 to vector<8x1xf32>
    %25 = arith.subf %24, %23 : vector<8x1xf32>
    %26 = math.exp %25 : vector<8x1xf32>
    %cst_8 = arith.constant 1.000000e+00 : f32
    %27 = vector.broadcast %cst_8 : f32 to vector<8x1xf32>
    %28 = arith.subf %27, %26 : vector<8x1xf32>
    %cst_9 = arith.constant 0.000000e+00 : f32
    %29 = vector.broadcast %cst_9 : f32 to vector<8x1xf32>
    %30 = arith.maximumf %28, %29 : vector<8x1xf32>
    %31 = arith.mulf %30, %30 : vector<8x1xf32>
    %32 = arith.mulf %31, %23 : vector<8x1xf32>
    %c0_10 = arith.constant 0 : index
    %c0_11 = arith.constant 0 : index
    %33 = vector.load %arg3[%c0_10, %c0_11] : memref<8x1xf32, #tpu.memory_space<vmem>>, vector<8x1xf32>
    %34 = arith.mulf %33, %32 : vector<8x1xf32>
    %cst_12 = arith.constant 0.000000e+00 : f32
    %35 = vector.broadcast %cst_12 : f32 to vector<8x1xf32>
    %36 = arith.select %7, %34, %35 : vector<8x1xi1>, vector<8x1xf32>
    %37 = vector.shape_cast %36 : vector<8x1xf32> to vector<1x8x1xf32>
    %cst_13 = arith.constant dense<0.000000e+00> : vector<1xf32>
    %38 = vector.multi_reduction <add>, %37, %cst_13 [1, 2] : vector<1x8x1xf32> to vector<1xf32>
    %39 = vector.shape_cast %38 : vector<1xf32> to vector<1x1x1xf32>
    %40 = vector.extract %39[0, 0, 0] : f32 from vector<1x1x1xf32>
    %41 = vector.broadcast %40 : f32 to vector<1x1x1xf32>
    %c0_14 = arith.constant 0 : index
    %c0_15 = arith.constant 0 : index
    %c0_16 = arith.constant 0 : index
    %42 = vector.load %arg4[%c0_14, %c0_15, %c0_16] : memref<1x1x1xf32, #tpu.memory_space<vmem>>, vector<1x1x1xf32>
    tpu.vector_store %arg4[%c0_14, %c0_15, %c0_16], %41 {strides = array<i32>} : memref<1x1x1xf32, #tpu.memory_space<vmem>>, vector<1x1x1xf32>,
    return
  }
  func.func @transform_0(%arg0: i32) -> (i32, i32) {
    %c0_i32 = arith.constant 0 : i32
    %c0_i32_0 = arith.constant 0 : i32
    return %arg0, %c0_i32 : i32, i32
  }
  func.func @transform_1(%arg0: i32) -> (i32, i32) {
    %c0_i32 = arith.constant 0 : i32
    %c0_i32_0 = arith.constant 0 : i32
    return %arg0, %c0_i32 : i32, i32
  }
  func.func @transform_2(%arg0: i32) -> (i32, i32) {
    %c0_i32 = arith.constant 0 : i32
    %c0_i32_0 = arith.constant 0 : i32
    return %arg0, %c0_i32 : i32, i32
  }
  func.func @transform_3(%arg0: i32) -> (i32, i32, i32) {
    %c0_i32 = arith.constant 0 : i32
    %c0_i32_0 = arith.constant 0 : i32
    %c0_i32_1 = arith.constant 0 : i32
    return %arg0, %c0_i32, %c0_i32_0 : i32, i32, i32
  }
}

</mosaic_0001>

<llo_original>
// kernel: tpu_custom_call.1
$region0: #{tpu_custom_call.1}
  #allocation0 [shape = 'u32[]', space=smem, size = 0x4, offset = 0x4, fixed_abs, tag = 'smem constant byte address 0x4 - core index']
  #allocation1 [shape = 'u32[72,128]{1,0:T(1,128)}', space=vmem, size = 0x9000, scoped, tag = 'internal scratch']
  %s0 = inlined_call_operand.vmem [shape: f32[8,32], index: 0, kind: input, shape index: {}]
  %s1 = inlined_call_operand.vmem [shape: s32[8,1], index: 1, kind: input, shape index: {}]
  %s2 = inlined_call_operand.vmem [shape: f32[8,1], index: 2, kind: input, shape index: {}]
  %s3 = inlined_call_operand.hbm [shape: f32[1,1,1], index: 3, kind: output, shape index: {}]
  %s4 = sld [smem:[#allocation0]]
  $region22: #{tpu_custom_call.1} parent=0
    _
  %s6 = ssub.s32 1, %s4
  %s7 = scalar_select 0, %s6, %s4
  $region1: #{tpu_custom_call.1} parent=0
    #allocation2 [shape = 'u8[512]{0}', space=vmem, size = 0x400, scoped, tag = 'output window, operand 0, single buffered']
    #allocation3 [shape = 's32[1]{0}', space=sflag, size = 0x4, scoped, tag = 'scoped memory for tpu_custom_call.1']
    %8 = vsyncpa [#allocation3], 0
    // Predicated region
    $region2: #{tpu_custom_call.1} parent=1 // pred_check
      _
    $region3: #{tpu_custom_call.1} parent=1 // pred_check_branch
      %10 = sbr.rel (0) target = $region5
    $region4: #{tpu_custom_call.1} parent=1 // pred_region
      _
    $region5: #{tpu_custom_call.1} parent=1 // pred_fallthru
      _
    // Predicated region
    $region6: #{tpu_custom_call.1} parent=1 // pred_check
      _
    $region7: #{tpu_custom_call.1} parent=1 // pred_check_branch
      %12 = sbr.rel (0) target = $region9
    $region8: #{tpu_custom_call.1} parent=1 // pred_region
      _
    $region9: #{tpu_custom_call.1} parent=1 // pred_fallthru
      _
    // Predicated region
    $region10: #{tpu_custom_call.1} parent=1 // pred_check
      _
    $region11: #{tpu_custom_call.1} parent=1 // pred_check_branch
      %14 = sbr.rel (0) target = $region13
    $region12: #{tpu_custom_call.1} parent=1 // pred_region
      _
    $region13: #{tpu_custom_call.1} parent=1 // pred_fallthru
      _
    %v15 = vld [vmem:[%s0] sm:$0xff]
    %v16 = vld [vmem:[%s1] sm:$0xff]
    %s17 = smul.u32 0, 8
    %v18 = vlaneseq
    %v19 = vshrl.u32 %v18, 7
    %v20 = vstv %s17
    %v21 = vadd.s32 %v20, %v19
    %vm22 = vcmp.lt.s32.totalorder %v21, 8
    %vm23 = vcmask 261120
    %v24 = vsel %vm23, %v15, -inf
    %25 = vmax.xlane.f32.xlu0 %v24
    %v26 = vpop.xlane.xlu0 %25
    %v27 = vsub.f32 %v15, %v26
    %v28 = vlaneseq
    %v29 = vand.u32 %v28, 127
    %30 = vset.pattern.permute.xlu0 0
    %31 = vperm.xlu0 %30, %v16
    %v32 = vpop.permute.xlu0 %31
    %vm33 = vcmp.eq.s32.totalorder %v29, %v32
    %v34 = vsel %vm33, %v27, 0.0
    %v35 = vsel %vm23, %v34, 0.0
    %36 = vadd.xlane.f32.xlu0 %v35
    %v37 = vpop.xlane.xlu0 %36
    %v38 = vmul.f32 %v27, 1.442695
    %v39 = vpow.pop %v38
    %v40 = vsel %vm23, %v39, 0.0
    %41 = vadd.xlane.f32.xlu0 %v40
    %v42 = vpop.xlane.xlu0 %41
    %v43 = vlog2.pop %v42
    %v44 = vmul.f32 %v43, 0.6931472
    %v45 = vsub.f32 %v44, %v37
    %v46 = vsub.f32 0.0, %v45
    %v47 = vmul.f32 %v46, 1.442695
    %v48 = vpow.pop %v47
    %v49 = vsub.f32 1.0, %v48
    %v50 = vmax.f32 %v49, 0.0
    %v51 = vmul.f32 %v50, %v50
    %v52 = vmul.f32 %v51, %v45
    %v53 = vld [vmem:[%s2] sm:$0xff]
    %v54 = vmul.f32 %v53, %v52
    %v55 = vsel %vm22, %v54, 0.0
    %vm56 = vcmask 7168
    %v57 = vsel %vm56, %v55, 0.0
    %58 = vadd.xlane.f32.xlu0 %v57
    %v59 = vpop.xlane.xlu0 %58
    %v60 = vrot.slane %v59, 4
    %v61 = vadd.f32 %v59, %v60
    %v62 = vrot.slane %v61, 2
    %v63 = vadd.f32 %v61, %v62
    %v64 = vrot.slane %v63, 1
    %v65 = vadd.f32 %v63, %v64
    %s66 = vtos %v65
    %v67 = vstv %s66
    %vm68 = vcmask 0
    %69 = vst.msk [vmem:[#allocation2] sm:$0x1] %vm68, %v67
    // Predicated region
    $region14: #{tpu_custom_call.1} parent=1 // pred_check
      _
    $region15: #{tpu_custom_call.1} parent=1 // pred_check_branch
      %71 = sbr.rel (0) target = $region17
    $region16: #{tpu_custom_call.1} parent=1 // pred_region
      %73 = vsyncadd [#allocation3], 0
      %s75 = sshll.u32 [#allocation2], 4
      %s76 = int_to_ptr.vmem [resolvable:$true] %s75
      %s77 = sshll.u32 %s3, 4
      %s78 = int_to_ptr.hbm [resolvable:$true] %s77
      %80 = dma.vmem_to_hbm [thread:$0]  %s76, 16, %s78, [#allocation3]
    $region17: #{tpu_custom_call.1} parent=1 // pred_fallthru
      _
    // Predicated region
    $region18: #{tpu_custom_call.1} parent=1 // pred_check
      _
    $region19: #{tpu_custom_call.1} parent=1 // pred_check_branch
      %82 = sbr.rel (0) target = $region21
    $region20: #{tpu_custom_call.1} parent=1 // pred_region
      %84 = dma.done [#allocation3], 16
    $region21: #{tpu_custom_call.1} parent=1 // pred_fallthru
      _
    %85 = vsyncpa [#allocation3], 1

</llo_original>
